<compile_context>
chip_gen: v7x
topology: tpu7x:2x2x1
jax: 0.10.0
libtpu: 0.0.40
codegen_flags: <defaults>
</compile_context>

<pallas_src>
import functools

import jax
import jax.numpy as jnp
import numpy as np
from jax.experimental import pallas as pl
from jax.experimental.pallas import tpu as pltpu


def _local_conv_kernel(x_ref, wc_ref, bc_ref, wl_ref, bias_ref, dw_ref, out_ref,
                       *, layers):
    # x_ref   : (F, T, TN)  VMEM  -- features x time x (batch*nodes) lane tile
    # wc_ref  : (2, TN)     VMEM  -- depthwise dilated Conv1d taps (per lane)
    # bc_ref  : (1, TN)     VMEM  -- Conv1d bias (per lane)
    # wl_ref  : (P, 9)      VMEM  -- nn.Linear(9, P) weight
    # bias_ref: (P, 1)      VMEM  -- folded bias: sum(dep_w)*lin_b + dep_b
    # dw_ref  : (F,)        SMEM  -- 1x1 Conv2d(F, 1) per-feature scalar weight
    # out_ref : (P, TN)     VMEM
    F, T, _ = x_ref.shape
    w0 = wc_ref[0:1, :]          # (1, TN) tap at t
    w1 = wc_ref[1:2, :]          # (1, TN) tap at t + dilation(=2)
    bc = bc_ref[...]             # (1, TN)

    h = x_ref[...]               # (F, T, TN) -- all features at once
    L = T
    for _ in range(layers):      # 3 stacked weight-shared dilated convs + ReLU
        h = jnp.maximum(h[:, :L - 2, :] * w0 + h[:, 2:L, :] * w1 + bc, 0.0)
        L -= 2

    # Fold the 1x1 Conv2d(F, 1) over features (linear, commutes with Linear).
    hsum = dw_ref[0] * h[0]
    for f in range(1, F):
        hsum = hsum + dw_ref[f] * h[f]           # (L, TN)

    # Single MXU matmul: Linear(9, P) applied to every (batch, node) lane.
    out_ref[...] = (jnp.dot(wl_ref[...], hsum,
                            preferred_element_type=jnp.float32)
                    + bias_ref[...])


def _lane_tile(m):
    # Full-extent block for small / non-128-divisible m; otherwise tile lanes.
    if m % 128 == 0 and m > 1024:
        for t in (1024, 512, 256, 128):
            if m % t == 0:
                return t
    return m


def local_conv_model_forward(X, params, layers=3):
    B, N, T, F = X.shape
    P, K = params["lin_w"].shape
    assert T - 2 * layers == K, (
        "local_conv_model hard-codes nn.Linear(in_features=9): need "
        f"T - 2*layers == {K}, got T={T}, layers={layers}")

    M = B * N
    # (B, N, T, F) -> (F, T, B*N): batch*nodes on lanes, time on sublanes.
    x = jnp.transpose(X.astype(jnp.float32), (3, 2, 0, 1)).reshape(F, T, M)
    wc = jnp.tile(params["conv_w"].astype(jnp.float32), (1, B))            # (2, B*N)
    bc = jnp.tile(params["conv_b"].astype(jnp.float32)[None, :], (1, B))   # (1, B*N)
    wl = params["lin_w"].astype(jnp.float32)                               # (P, K)
    dw = params["dep_w"].astype(jnp.float32)                               # (F,)
    bias = (jnp.sum(dw) * params["lin_b"].astype(jnp.float32)
            + params["dep_b"].astype(jnp.float32)[0])[:, None]             # (P, 1)

    TN = _lane_tile(M)
    grid = (M // TN,)
    kernel = functools.partial(_local_conv_kernel, layers=layers)
    out = pl.pallas_call(
        kernel,
        out_shape=jax.ShapeDtypeStruct((P, M), jnp.float32),
        grid=grid,
        in_specs=[
            pl.BlockSpec((F, T, TN), lambda j: (0, 0, j)),
            pl.BlockSpec((2, TN), lambda j: (0, j)),
            pl.BlockSpec((1, TN), lambda j: (0, j)),
            pl.BlockSpec((P, K), lambda j: (0, 0)),
            pl.BlockSpec((P, 1), lambda j: (0, 0)),
            pl.BlockSpec(memory_space=pltpu.MemorySpace.SMEM),
        ],
        out_specs=pl.BlockSpec((P, TN), lambda j: (0, j)),
        compiler_params=pltpu.CompilerParams(
            dimension_semantics=("parallel",)),
    )(x, wc, bc, wl, bias, dw)

    # (P, B*N) -> (B, N, P), matching the torch output layout.
    return jnp.transpose(out.reshape(P, B, N), (1, 2, 0))


def _dil_conv_kernel(q_ref, w_ref, b_ref, out_ref):
    # dila_conv2: depthwise Conv1d(kernel=2, dilation=2, groups=N) on (B, N, T).
    T = q_ref.shape[2]
    q = q_ref[0]                                  # (N, T)
    out_ref[0] = q[:, :T - 2] * w_ref[:, 0:1] + q[:, 2:] * w_ref[:, 1:2] + b_ref[...]


def dil_conv2_forward(query, w, b):
    # The torch forward computes self.dil(query) but never uses the result;
    # kept only for optional parity and NOT launched by default (pure latency).
    B, N, T = query.shape
    return pl.pallas_call(
        _dil_conv_kernel,
        out_shape=jax.ShapeDtypeStruct((B, N, T - 2), jnp.float32),
        grid=(B,),
        in_specs=[
            pl.BlockSpec((1, N, T), lambda i: (i, 0, 0)),
            pl.BlockSpec((N, 2), lambda i: (0, 0)),
            pl.BlockSpec((N, 1), lambda i: (0, 0)),
        ],
        out_specs=pl.BlockSpec((1, N, T - 2), lambda i: (i, 0, 0)),
        compiler_params=pltpu.CompilerParams(dimension_semantics=("parallel",)),
    )(query.astype(jnp.float32), w, b[:, None])


def krnn_conv_local2_forward(A, X, params, *, compute_dead_query_conv=False):
    del A  # deprecated in the pure time-series model (unused by the forward)
    if compute_dead_query_conv:
        # `query = self.dil(X[..., 0])` -- computed but discarded in torch.
        dil_conv2_forward(X[:, :, :, 0], params["dil_w"], params["dil_b"])
    # TODO(synk): self.globalrnn is torch.load('net.pkl') (unknown external
    # architecture, cannot be reproduced in-script); its contribution out1 is
    # taken as zero, so out1 + out2 reduces to out2.
    return local_conv_model_forward(X, params)


def reference_forward(X, params):
    # Pure-jnp reference for the implementable path (local_conv_model).
    x = jnp.transpose(X, (0, 3, 2, 1))                     # (B, F, T, N)
    wc, bc = params["conv_w"], params["conv_b"]
    h = x
    for _ in range(3):
        h = jnp.maximum(h[:, :, :-2, :] * wc[0] + h[:, :, 2:, :] * wc[1] + bc, 0.0)
    y = jnp.einsum("pt,bftn->bfpn", params["lin_w"], h) + params["lin_b"][None, None, :, None]
    out2 = jnp.einsum("f,bfpn->bpn", params["dep_w"], y) + params["dep_b"][0]
    return jnp.transpose(out2, (0, 2, 1))                  # (B, N, P)


if __name__ == "__main__":
    # X: (batch, num_nodes, num_timesteps_input, num_features)
    # num_timesteps_input must be 15: three dilated (k=2, d=2) convs shrink
    # 15 -> 9, matching the hard-coded nn.Linear(in_features=9).
    B, N, T, F = 2, 8, 15, 3
    P = 4                                 # num_timesteps_output

    key = jax.random.PRNGKey(0)
    ks = jax.random.split(key, 8)
    X = jax.random.normal(ks[0], (B, N, T, F), jnp.float32)
    A = jnp.eye(N, dtype=jnp.float32)     # deprecated / unused by the forward

    params = {
        # dila_conv inside local_conv_model: Conv1d(N, N, k=2, dilation=2, groups=N)
        # torch weight (N,1,2) stored transposed as (2, N); bias (N,)
        "conv_w": 0.5 * jax.random.normal(ks[1], (2, N), jnp.float32),
        "conv_b": 0.1 * jax.random.normal(ks[2], (N,), jnp.float32),
        # nn.Linear(9, P)
        "lin_w": 0.3 * jax.random.normal(ks[3], (P, 9), jnp.float32),
        "lin_b": 0.1 * jax.random.normal(ks[4], (P,), jnp.float32),
        # depth_linear: Conv2d(F, 1, kernel_size=1)
        "dep_w": 0.3 * jax.random.normal(ks[5], (F,), jnp.float32),
        "dep_b": 0.1 * jax.random.normal(ks[6], (1,), jnp.float32),
        # self.dil: dila_conv2 Conv1d(N, N, k=2, dilation=2, groups=N) (dead code)
        "dil_w": 0.5 * jax.random.normal(ks[7], (N, 2), jnp.float32),
        "dil_b": jnp.zeros((N,), jnp.float32),
    }

    out = krnn_conv_local2_forward(A, X, params)
    out = jax.block_until_ready(out)

    ref = reference_forward(X, params)
    np.testing.assert_allclose(np.asarray(out), np.asarray(ref), rtol=1e-5, atol=1e-5)
    assert out.shape == (B, N, P)
    print("KERNEL_OK")
</pallas_src>

<mosaic_0001>
module attributes {stable_mosaic.version = 11 : i64} {
  func.func @_local_conv_kernel(%arg0: i32, %arg1: memref<3x15x16xf32, #tpu.memory_space<vmem>>, %arg2: memref<2x16xf32, #tpu.memory_space<vmem>>, %arg3: memref<1x16xf32, #tpu.memory_space<vmem>>, %arg4: memref<4x9xf32, #tpu.memory_space<vmem>>, %arg5: memref<4x1xf32, #tpu.memory_space<vmem>>, %arg6: memref<3xf32, #tpu.memory_space<smem>>, %arg7: memref<4x16xf32, #tpu.memory_space<vmem>>) attributes {dimension_semantics = [#tpu.dimension_semantics<parallel>], iteration_bounds = array<i64: 1>, scalar_prefetch = 0 : i64, scratch_operands = 0 : i64, tpu.core_type = #tpu.core_type<tc>, window_params = [{transform_indices = @transform_0, window_bounds = array<i64: 3, 15, 16>}, {transform_indices = @transform_1, window_bounds = array<i64: 2, 16>}, {transform_indices = @transform_2, window_bounds = array<i64: 1, 16>}, {pipeline_mode = #tpu.pipeline_mode<synchronous>, transform_indices = @transform_3, window_bounds = array<i64: 4, 9>}, {pipeline_mode = #tpu.pipeline_mode<synchronous>, transform_indices = @transform_4, window_bounds = array<i64: 4, 1>}, {transform_indices = @transform_5, window_bounds = array<i64: 3>}, {transform_indices = @transform_6, window_bounds = array<i64: 4, 16>}]} {
    %c0 = arith.constant 0 : index
    %c0_0 = arith.constant 0 : index
    %0 = vector.load %arg2[%c0, %c0_0] : memref<2x16xf32, #tpu.memory_space<vmem>>, vector<1x16xf32>
    %c1 = arith.constant 1 : index
    %c0_1 = arith.constant 0 : index
    %1 = vector.load %arg2[%c1, %c0_1] : memref<2x16xf32, #tpu.memory_space<vmem>>, vector<1x16xf32>
    %c0_2 = arith.constant 0 : index
    %c0_3 = arith.constant 0 : index
    %2 = vector.load %arg3[%c0_2, %c0_3] : memref<1x16xf32, #tpu.memory_space<vmem>>, vector<1x16xf32>
    %c0_4 = arith.constant 0 : index
    %c0_5 = arith.constant 0 : index
    %c0_6 = arith.constant 0 : index
    %3 = vector.load %arg1[%c0_4, %c0_5, %c0_6] : memref<3x15x16xf32, #tpu.memory_space<vmem>>, vector<3x15x16xf32>
    %4 = vector.extract_strided_slice %3 {offsets = [0, 0, 0], sizes = [3, 13, 16], strides = [1, 1, 1]} : vector<3x15x16xf32> to vector<3x13x16xf32>
    %5 = vector.shape_cast %0 : vector<1x16xf32> to vector<1x1x16xf32>
    %6 = vector.broadcast %5 : vector<1x1x16xf32> to vector<3x13x16xf32>
    %7 = arith.mulf %4, %6 : vector<3x13x16xf32>
    %8 = vector.extract_strided_slice %3 {offsets = [0, 2, 0], sizes = [3, 13, 16], strides = [1, 1, 1]} : vector<3x15x16xf32> to vector<3x13x16xf32>
    %9 = vector.shape_cast %1 : vector<1x16xf32> to vector<1x1x16xf32>
    %10 = vector.broadcast %9 : vector<1x1x16xf32> to vector<3x13x16xf32>
    %11 = arith.mulf %8, %10 : vector<3x13x16xf32>
    %12 = arith.addf %7, %11 : vector<3x13x16xf32>
    %13 = vector.shape_cast %2 : vector<1x16xf32> to vector<1x1x16xf32>
    %14 = vector.broadcast %13 : vector<1x1x16xf32> to vector<3x13x16xf32>
    %15 = arith.addf %12, %14 : vector<3x13x16xf32>
    %cst = arith.constant 0.000000e+00 : f32
    %16 = vector.broadcast %cst : f32 to vector<3x13x16xf32>
    %17 = arith.maximumf %15, %16 : vector<3x13x16xf32>
    %18 = vector.extract_strided_slice %17 {offsets = [0, 0, 0], sizes = [3, 11, 16], strides = [1, 1, 1]} : vector<3x13x16xf32> to vector<3x11x16xf32>
    %19 = vector.shape_cast %0 : vector<1x16xf32> to vector<1x1x16xf32>
    %20 = vector.broadcast %19 : vector<1x1x16xf32> to vector<3x11x16xf32>
    %21 = arith.mulf %18, %20 : vector<3x11x16xf32>
    %22 = vector.extract_strided_slice %17 {offsets = [0, 2, 0], sizes = [3, 11, 16], strides = [1, 1, 1]} : vector<3x13x16xf32> to vector<3x11x16xf32>
    %23 = vector.shape_cast %1 : vector<1x16xf32> to vector<1x1x16xf32>
    %24 = vector.broadcast %23 : vector<1x1x16xf32> to vector<3x11x16xf32>
    %25 = arith.mulf %22, %24 : vector<3x11x16xf32>
    %26 = arith.addf %21, %25 : vector<3x11x16xf32>
    %27 = vector.shape_cast %2 : vector<1x16xf32> to vector<1x1x16xf32>
    %28 = vector.broadcast %27 : vector<1x1x16xf32> to vector<3x11x16xf32>
    %29 = arith.addf %26, %28 : vector<3x11x16xf32>
    %cst_7 = arith.constant 0.000000e+00 : f32
    %30 = vector.broadcast %cst_7 : f32 to vector<3x11x16xf32>
    %31 = arith.maximumf %29, %30 : vector<3x11x16xf32>
    %32 = vector.extract_strided_slice %31 {offsets = [0, 0, 0], sizes = [3, 9, 16], strides = [1, 1, 1]} : vector<3x11x16xf32> to vector<3x9x16xf32>
    %33 = vector.shape_cast %0 : vector<1x16xf32> to vector<1x1x16xf32>
    %34 = vector.broadcast %33 : vector<1x1x16xf32> to vector<3x9x16xf32>
    %35 = arith.mulf %32, %34 : vector<3x9x16xf32>
    %36 = vector.extract_strided_slice %31 {offsets = [0, 2, 0], sizes = [3, 9, 16], strides = [1, 1, 1]} : vector<3x11x16xf32> to vector<3x9x16xf32>
    %37 = vector.shape_cast %1 : vector<1x16xf32> to vector<1x1x16xf32>
    %38 = vector.broadcast %37 : vector<1x1x16xf32> to vector<3x9x16xf32>
    %39 = arith.mulf %36, %38 : vector<3x9x16xf32>
    %40 = arith.addf %35, %39 : vector<3x9x16xf32>
    %41 = vector.shape_cast %2 : vector<1x16xf32> to vector<1x1x16xf32>
    %42 = vector.broadcast %41 : vector<1x1x16xf32> to vector<3x9x16xf32>
    %43 = arith.addf %40, %42 : vector<3x9x16xf32>
    %cst_8 = arith.constant 0.000000e+00 : f32
    %44 = vector.broadcast %cst_8 : f32 to vector<3x9x16xf32>
    %45 = arith.maximumf %43, %44 : vector<3x9x16xf32>
    %c0_9 = arith.constant 0 : index
    %46 = memref.load %arg6[%c0_9] : memref<3xf32, #tpu.memory_space<smem>>
    %47 = vector.extract_strided_slice %45 {offsets = [0, 0, 0], sizes = [1, 9, 16], strides = [1, 1, 1]} : vector<3x9x16xf32> to vector<1x9x16xf32>
    %48 = vector.shape_cast %47 : vector<1x9x16xf32> to vector<9x16xf32>
    %49 = vector.broadcast %46 : f32 to vector<9x16xf32>
    %50 = arith.mulf %49, %48 : vector<9x16xf32>
    %c1_10 = arith.constant 1 : index
    %51 = memref.load %arg6[%c1_10] : memref<3xf32, #tpu.memory_space<smem>>
    %52 = vector.extract_strided_slice %45 {offsets = [1, 0, 0], sizes = [1, 9, 16], strides = [1, 1, 1]} : vector<3x9x16xf32> to vector<1x9x16xf32>
    %53 = vector.shape_cast %52 : vector<1x9x16xf32> to vector<9x16xf32>
    %54 = vector.broadcast %51 : f32 to vector<9x16xf32>
    %55 = arith.mulf %54, %53 : vector<9x16xf32>
    %56 = arith.addf %50, %55 : vector<9x16xf32>
    %c2 = arith.constant 2 : index
    %57 = memref.load %arg6[%c2] : memref<3xf32, #tpu.memory_space<smem>>
    %58 = vector.extract_strided_slice %45 {offsets = [2, 0, 0], sizes = [1, 9, 16], strides = [1, 1, 1]} : vector<3x9x16xf32> to vector<1x9x16xf32>
    %59 = vector.shape_cast %58 : vector<1x9x16xf32> to vector<9x16xf32>
    %60 = vector.broadcast %57 : f32 to vector<9x16xf32>
    %61 = arith.mulf %60, %59 : vector<9x16xf32>
    %62 = arith.addf %56, %61 : vector<9x16xf32>
    %c0_11 = arith.constant 0 : index
    %c0_12 = arith.constant 0 : index
    %63 = vector.load %arg4[%c0_11, %c0_12] : memref<4x9xf32, #tpu.memory_space<vmem>>, vector<4x9xf32>
    %cst_13 = arith.constant dense<0.000000e+00> : vector<4x16xf32>
    %64 = tpu.matmul %63, %62, %cst_13 {dimension_numbers = #tpu.dot_dimension_numbers<[1], [0], [0], [1], [0, 0, 1, 1], [], []>} : vector<4x9xf32>, vector<9x16xf32>, vector<4x16xf32> -> vector<4x16xf32>
    %c0_14 = arith.constant 0 : index
    %c0_15 = arith.constant 0 : index
    %65 = vector.load %arg5[%c0_14, %c0_15] : memref<4x1xf32, #tpu.memory_space<vmem>>, vector<4x1xf32>
    %66 = vector.broadcast %65 : vector<4x1xf32> to vector<4x16xf32>
    %67 = arith.addf %64, %66 : vector<4x16xf32>
    %c0_16 = arith.constant 0 : index
    %c0_17 = arith.constant 0 : index
    %68 = vector.load %arg7[%c0_16, %c0_17] : memref<4x16xf32, #tpu.memory_space<vmem>>, vector<4x16xf32>
    tpu.vector_store %arg7[%c0_16, %c0_17], %67 {strides = array<i32>} : memref<4x16xf32, #tpu.memory_space<vmem>>, vector<4x16xf32>,
    return
  }
  func.func @transform_0(%arg0: i32) -> (i32, i32, i32) {
    %c0_i32 = arith.constant 0 : i32
    %c0_i32_0 = arith.constant 0 : i32
    %c0_i32_1 = arith.constant 0 : i32
    return %c0_i32, %c0_i32_0, %arg0 : i32, i32, i32
  }
  func.func @transform_1(%arg0: i32) -> (i32, i32) {
    %c0_i32 = arith.constant 0 : i32
    %c0_i32_0 = arith.constant 0 : i32
    return %c0_i32, %arg0 : i32, i32
  }
  func.func @transform_2(%arg0: i32) -> (i32, i32) {
    %c0_i32 = arith.constant 0 : i32
    %c0_i32_0 = arith.constant 0 : i32
    return %c0_i32, %arg0 : i32, i32
  }
  func.func @transform_3(%arg0: i32) -> (i32, i32) {
    %c0_i32 = arith.constant 0 : i32
    %c0_i32_0 = arith.constant 0 : i32
    %c0_i32_1 = arith.constant 0 : i32
    return %c0_i32, %c0_i32_0 : i32, i32
  }
  func.func @transform_4(%arg0: i32) -> (i32, i32) {
    %c0_i32 = arith.constant 0 : i32
    %c0_i32_0 = arith.constant 0 : i32
    %c0_i32_1 = arith.constant 0 : i32
    return %c0_i32, %c0_i32_0 : i32, i32
  }
  func.func @transform_5(%arg0: i32) -> i32 {
    %c0_i32 = arith.constant 0 : i32
    %c0_i32_0 = arith.constant 0 : i32
    return %c0_i32 : i32
  }
  func.func @transform_6(%arg0: i32) -> (i32, i32) {
    %c0_i32 = arith.constant 0 : i32
    %c0_i32_0 = arith.constant 0 : i32
    return %c0_i32, %arg0 : i32, i32
  }
}

</mosaic_0001>

<llo_original>
// kernel: tpu_custom_call.1
$region0: #{tpu_custom_call.1}
  #allocation0 [shape = 'u32[]', space=smem, size = 0x4, offset = 0x4, fixed_abs, tag = 'smem constant byte address 0x4 - core index']
  #allocation1 [shape = 'u32[144,128]{1,0:T(1,128)}', space=vmem, size = 0x12000, scoped, tag = 'internal scratch']
  %s0 = inlined_call_operand.hbm [shape: f32[3,15,16], index: 0, kind: input, shape index: {}]
  %s1 = inlined_call_operand.vmem [shape: f32[2,16], index: 1, kind: input, shape index: {}]
  %s2 = inlined_call_operand.vmem [shape: f32[1,16], index: 2, kind: input, shape index: {}]
  %s3 = inlined_call_operand.vmem [shape: f32[4,9], index: 3, kind: input, shape index: {}]
  %s4 = inlined_call_operand.vmem [shape: f32[4,1], index: 4, kind: input, shape index: {}]
  %s5 = inlined_call_operand.vmem [shape: f32[3], index: 5, kind: input, shape index: {}]
  %s6 = inlined_call_operand.hbm [shape: f32[4,16], index: 6, kind: output, shape index: {}]
  %s7 = sld [smem:[#allocation0]]
  $region42: #{tpu_custom_call.1} parent=0
    _
  %s9 = ssub.s32 1, %s7
  %s10 = scalar_select 0, %s9, %s7
  $region1: #{tpu_custom_call.1} parent=0
    #allocation2 [shape = 'u8[24576]{0}', space=vmem, size = 0x6000, scoped, tag = 'input window, operand 0, single buffered']
    #allocation3 [shape = 's32[1]{0}', space=sflag, size = 0x4, scoped, tag = 'scoped memory for tpu_custom_call.1']
    #allocation4 [shape = 's32[1]{0}', space=sflag, size = 0x4, scoped, tag = 'scoped memory for tpu_custom_call.1']
    #allocation5 [shape = 's32[1]{0}', space=sflag, size = 0x4, scoped, tag = 'scoped memory for tpu_custom_call.1']
    #allocation6 [shape = 'u8[512]{0}', space=smem, size = 0x200, scoped, tag = 'input window, operand 5, single buffered']
    #allocation7 [shape = 'u8[2048]{0}', space=vmem, size = 0x800, scoped, tag = 'output window, operand 0, single buffered']
    %11 = vsyncpa [#allocation3], 0
    %12 = vsyncpa [#allocation5], 0
    %13 = vsyncpa [#allocation4], 0
    // Predicated region
    $region2: #{tpu_custom_call.1} parent=1 // pred_check
      _
    $region3: #{tpu_custom_call.1} parent=1 // pred_check_branch
      %15 = sbr.rel (0) target = $region5
    $region4: #{tpu_custom_call.1} parent=1 // pred_region
      %s17 = ssub.s32 768, 768
      %18 = vsyncadd [#allocation3], %s17
      %s19 = sshll.u32 [#allocation2], 4
      %s20 = int_to_ptr.vmem [resolvable:$true] %s19
      %25 = dma.hbm_to_vmem [thread:$0]  %s0, 768, %s20, [#allocation3], 128, 128, 8
    $region5: #{tpu_custom_call.1} parent=1 // pred_fallthru
      _
    // Predicated region
    $region6: #{tpu_custom_call.1} parent=1 // pred_check
      _
    $region7: #{tpu_custom_call.1} parent=1 // pred_check_branch
      %27 = sbr.rel (0) target = $region9
    $region8: #{tpu_custom_call.1} parent=1 // pred_region
      _
    $region9: #{tpu_custom_call.1} parent=1 // pred_fallthru
      _
    // Predicated region
    $region10: #{tpu_custom_call.1} parent=1 // pred_check
      _
    $region11: #{tpu_custom_call.1} parent=1 // pred_check_branch
      %29 = sbr.rel (0) target = $region13
    $region12: #{tpu_custom_call.1} parent=1 // pred_region
      _
    $region13: #{tpu_custom_call.1} parent=1 // pred_fallthru
      _
    // Predicated region
    $region14: #{tpu_custom_call.1} parent=1 // pred_check
      _
    $region15: #{tpu_custom_call.1} parent=1 // pred_check_branch
      %31 = sbr.rel (0) target = $region17
    $region16: #{tpu_custom_call.1} parent=1 // pred_region
      _
    $region17: #{tpu_custom_call.1} parent=1 // pred_fallthru
      _
    // Predicated region
    $region18: #{tpu_custom_call.1} parent=1 // pred_check
      _
    $region19: #{tpu_custom_call.1} parent=1 // pred_check_branch
      %33 = sbr.rel (0) target = $region21
    $region20: #{tpu_custom_call.1} parent=1 // pred_region
      _
    $region21: #{tpu_custom_call.1} parent=1 // pred_fallthru
      _
    // Predicated region
    $region22: #{tpu_custom_call.1} parent=1 // pred_check
      _
    $region23: #{tpu_custom_call.1} parent=1 // pred_check_branch
      %35 = sbr.rel (0) target = $region25
    $region24: #{tpu_custom_call.1} parent=1 // pred_region
      %s37 = ssub.s32 16, 16
      %38 = vsyncadd [#allocation5], %s37
      %s40 = sshll.u32 %s5, 4
      %s41 = int_to_ptr.vmem [resolvable:$true] %s40
      %43 = dma.vmem_to_smem %s41, 16, [#allocation6], [#allocation5]
    $region25: #{tpu_custom_call.1} parent=1 // pred_fallthru
      _
    // Predicated region
    $region26: #{tpu_custom_call.1} parent=1 // pred_check
      _
    $region27: #{tpu_custom_call.1} parent=1 // pred_check_branch
      %45 = sbr.rel (0) target = $region29
    $region28: #{tpu_custom_call.1} parent=1 // pred_region
      %46 = dma.done [#allocation3], 768
    $region29: #{tpu_custom_call.1} parent=1 // pred_fallthru
      _
    // Predicated region
    $region30: #{tpu_custom_call.1} parent=1 // pred_check
      _
    $region31: #{tpu_custom_call.1} parent=1 // pred_check_branch
      %48 = sbr.rel (0) target = $region33
    $region32: #{tpu_custom_call.1} parent=1 // pred_region
      %49 = dma.done [#allocation5], 16
    $region33: #{tpu_custom_call.1} parent=1 // pred_fallthru
      _
    %50 = sfence
    %v51 = vld [vmem:[%s1] sm:$0x1]
    %v52 = vld [vmem:[%s1 + $0x1] sm:$0x1]
    %v53 = vld [vmem:[%s2] sm:$0x1]
    %v54 = vld [vmem:[#allocation2] sm:$0xff]
    %v55 = vld [vmem:[#allocation2 + $0x8] sm:$0x7f]
    %v56 = vld [vmem:[#allocation2 + $0x10] sm:$0xff]
    %v57 = vld [vmem:[#allocation2 + $0x18] sm:$0x7f]
    %v58 = vld [vmem:[#allocation2 + $0x20] sm:$0xff]
    %v59 = vld [vmem:[#allocation2 + $0x28] sm:$0x7f]
    %v60 = vlaneseq
    %v61 = vshrl.u32 %v60, 7
    %v62 = vsub.s32 0, %v61
    %v63 = vrot.slane %v51, %v62
    %v64 = vmul.f32 %v54, %v63
    %v65 = vmul.f32 %v55, %v63
    %v66 = vmul.f32 %v56, %v63
    %v67 = vmul.f32 %v57, %v63
    %v68 = vmul.f32 %v58, %v63
    %v69 = vmul.f32 %v59, %v63
    %v70 = vlaneseq
    %v71 = vshrl.u32 %v70, 7
    %v72 = vsub.s32 0, %v71
    %v73 = vrot.slane %v52, %v72
    %v74 = vmul.f32 %v54, %v73
    %v75 = vmul.f32 %v55, %v73
    %v76 = vmul.f32 %v56, %v73
    %v77 = vmul.f32 %v57, %v73
    %v78 = vmul.f32 %v58, %v73
    %v79 = vmul.f32 %v59, %v73
    %vm86 = vcmask 1045504
    %v87 = vrot.slane %v74, 2
    %v88 = vrot.slane %v75, 2
    %v89 = vsel %vm86, %v87, %v88
    %v90 = vrot.slane %v76, 2
    %v91 = vrot.slane %v77, 2
    %v92 = vsel %vm86, %v90, %v91
    %v93 = vrot.slane %v78, 2
    %v94 = vrot.slane %v79, 2
    %v95 = vsel %vm86, %v93, %v94
    %v102 = vadd.f32 %v64, %v89
    %v103 = vadd.f32 %v65, %v88
    %v104 = vadd.f32 %v66, %v92
    %v105 = vadd.f32 %v67, %v91
    %v106 = vadd.f32 %v68, %v95
    %v107 = vadd.f32 %v69, %v94
    %v109 = vlaneseq
    %v110 = vshrl.u32 %v109, 7
    %v111 = vsub.s32 0, %v110
    %v112 = vrot.slane %v53, %v111
    %v114 = vadd.f32 %v102, %v112
    %v115 = vadd.f32 %v103, %v112
    %v116 = vadd.f32 %v104, %v112
    %v117 = vadd.f32 %v105, %v112
    %v118 = vadd.f32 %v106, %v112
    %v119 = vadd.f32 %v107, %v112
    %v120 = vmax.f32 %v114, 0.0
    %v121 = vmax.f32 %v115, 0.0
    %v122 = vmax.f32 %v116, 0.0
    %v123 = vmax.f32 %v117, 0.0
    %v124 = vmax.f32 %v118, 0.0
    %v125 = vmax.f32 %v119, 0.0
    %v126 = vmul.f32 %v120, %v63
    %v127 = vmul.f32 %v121, %v63
    %v128 = vmul.f32 %v122, %v63
    %v129 = vmul.f32 %v123, %v63
    %v130 = vmul.f32 %v124, %v63
    %v131 = vmul.f32 %v125, %v63
    %v132 = vmul.f32 %v120, %v73
    %v133 = vmul.f32 %v121, %v73
    %v134 = vmul.f32 %v122, %v73
    %v135 = vmul.f32 %v123, %v73
    %v136 = vmul.f32 %v124, %v73
    %v137 = vmul.f32 %v125, %v73
    %v144 = vrot.slane %v132, 2
    %v145 = vrot.slane %v133, 2
    %v146 = vsel %vm86, %v144, %v145
    %v147 = vrot.slane %v134, 2
    %v148 = vrot.slane %v135, 2
    %v149 = vsel %vm86, %v147, %v148
    %v150 = vrot.slane %v136, 2
    %v151 = vrot.slane %v137, 2
    %v152 = vsel %vm86, %v150, %v151
    %v159 = vadd.f32 %v126, %v146
    %v160 = vadd.f32 %v127, %v145
    %v161 = vadd.f32 %v128, %v149
    %v162 = vadd.f32 %v129, %v148
    %v163 = vadd.f32 %v130, %v152
    %v164 = vadd.f32 %v131, %v151
    %v165 = vadd.f32 %v159, %v112
    %v166 = vadd.f32 %v160, %v112
    %v167 = vadd.f32 %v161, %v112
    %v168 = vadd.f32 %v162, %v112
    %v169 = vadd.f32 %v163, %v112
    %v170 = vadd.f32 %v164, %v112
    %v171 = vmax.f32 %v165, 0.0
    %v172 = vmax.f32 %v166, 0.0
    %v173 = vmax.f32 %v167, 0.0
    %v174 = vmax.f32 %v168, 0.0
    %v175 = vmax.f32 %v169, 0.0
    %v176 = vmax.f32 %v170, 0.0
    %v177 = vmul.f32 %v171, %v63
    %v178 = vmul.f32 %v172, %v63
    %v179 = vmul.f32 %v173, %v63
    %v180 = vmul.f32 %v174, %v63
    %v181 = vmul.f32 %v175, %v63
    %v182 = vmul.f32 %v176, %v63
    %v183 = vmul.f32 %v171, %v73
    %v184 = vmul.f32 %v172, %v73
    %v185 = vmul.f32 %v173, %v73
    %v186 = vmul.f32 %v174, %v73
    %v187 = vmul.f32 %v175, %v73
    %v188 = vmul.f32 %v176, %v73
    %v195 = vrot.slane %v183, 2
    %v196 = vrot.slane %v184, 2
    %v197 = vsel %vm86, %v195, %v196
    %v198 = vrot.slane %v185, 2
    %v199 = vrot.slane %v186, 2
    %v200 = vsel %vm86, %v198, %v199
    %v201 = vrot.slane %v187, 2
    %v202 = vrot.slane %v188, 2
    %v203 = vsel %vm86, %v201, %v202
    %v210 = vadd.f32 %v177, %v197
    %v211 = vadd.f32 %v178, %v196
    %v212 = vadd.f32 %v179, %v200
    %v213 = vadd.f32 %v180, %v199
    %v214 = vadd.f32 %v181, %v203
    %v215 = vadd.f32 %v182, %v202
    %v216 = vadd.f32 %v210, %v112
    %v217 = vadd.f32 %v211, %v112
    %v218 = vadd.f32 %v212, %v112
    %v219 = vadd.f32 %v213, %v112
    %v220 = vadd.f32 %v214, %v112
    %v221 = vadd.f32 %v215, %v112
    %v222 = vmax.f32 %v216, 0.0
    %v223 = vmax.f32 %v217, 0.0
    %v224 = vmax.f32 %v218, 0.0
    %v225 = vmax.f32 %v219, 0.0
    %v226 = vmax.f32 %v220, 0.0
    %v227 = vmax.f32 %v221, 0.0
    %s228 = sld [smem:[#allocation6]]
    %v229 = vstv %s228
    %v230 = vmul.f32 %v229, %v222
    %v231 = vmul.f32 %v229, %v223
    %s232 = sld [smem:[#allocation6 + $0x1]]
    %v233 = vstv %s232
    %v234 = vmul.f32 %v233, %v224
    %v235 = vmul.f32 %v233, %v225
    %v236 = vadd.f32 %v230, %v234
    %v237 = vadd.f32 %v231, %v235
    %s238 = sld [smem:[#allocation6 + $0x2]]
    %v239 = vstv %s238
    %v240 = vmul.f32 %v239, %v226
    %v241 = vmul.f32 %v239, %v227
    %v242 = vadd.f32 %v236, %v240
    %v243 = vadd.f32 %v237, %v241
    %v244 = vld [vmem:[%s3] sm:$0xf]
    %v245 = vld [vmem:[%s4] sm:$0xf]
    %247 = vset.pattern.permute.xlu0 0
    %248 = vperm.xlu0 %247, %v245
    %v249 = vpop.permute.xlu0 %248
    %vm251 = vcmask 72704
    %v253 = vsel %vm251, %v244, 0
    %vm255 = vcmask 1040384
    %v257 = vsel %vm255, %v243, 0
    %259 = vmatprep.subr.mxu0 0.0
    %260 = vmatpush1.msra.mxu0 %v242
    %261 = vmatprep.subr.mxu0 0.0
    %262 = vmatpush1.msra.mxu0 %v257
    %263 = vmatprep.subr.mxu0 0.0
    %264 = vmatpush1.msra.mxu0 0.0
    %265 = vmatprep.subr.mxu0 0.0
    %266 = vmatpush1.msra.mxu0 0.0
    %267 = vmatprep.subr.mxu0 0.0
    %268 = vmatpush1.msra.mxu0 0.0
    %269 = vmatprep.subr.mxu0 0.0
    %270 = vmatpush1.msra.mxu0 0.0
    %271 = vmatprep.subr.mxu0 0.0
    %272 = vmatpush1.msra.mxu0 0.0
    %273 = vmatprep.subr.mxu0 0.0
    %274 = vmatpush1.msra.mxu0 0.0
    %275 = vmatprep.subr.mxu0 0.0
    %276 = vmatpush1.msra.mxu0 0.0
    %277 = vmatprep.subr.mxu0 0.0
    %278 = vmatpush1.msra.mxu0 0.0
    %279 = vmatprep.subr.mxu0 0.0
    %280 = vmatpush1.msra.mxu0 0.0
    %281 = vmatprep.subr.mxu0 0.0
    %282 = vmatpush1.msra.mxu0 0.0
    %283 = vmatprep.subr.mxu0 0.0
    %284 = vmatpush1.msra.mxu0 0.0
    %285 = vmatprep.subr.mxu0 0.0
    %286 = vmatpush1.msra.mxu0 0.0
    %287 = vmatprep.subr.mxu0 0.0
    %288 = vmatpush1.msra.mxu0 0.0
    %289 = vmatprep.subr.mxu0 0.0
    %290 = vmatpush1.msra.mxu0 0.0
    %291 = vmatprep.subr.mxu0 0.0
    %292 = vmatpush1.msra.mxu0 0.0
    %293 = vmatprep.subr.mxu0 0.0
    %294 = vmatpush1.msra.mxu0 0.0
    %295 = vmatprep.subr.mxu0 0.0
    %296 = vmatpush1.msra.mxu0 0.0
    %297 = vmatprep.subr.mxu0 0.0
    %298 = vmatpush1.msra.mxu0 0.0
    %299 = vmatprep.subr.mxu0 0.0
    %300 = vmatpush1.msra.mxu0 0.0
    %301 = vmatprep.subr.mxu0 0.0
    %302 = vmatpush1.msra.mxu0 0.0
    %303 = vmatprep.subr.mxu0 0.0
    %304 = vmatpush1.msra.mxu0 0.0
    %305 = vmatprep.subr.mxu0 0.0
    %306 = vmatpush1.msra.mxu0 0.0
    %307 = vmatprep.subr.mxu0 0.0
    %308 = vmatpush1.msra.mxu0 0.0
    %309 = vmatprep.subr.mxu0 0.0
    %310 = vmatpush1.msra.mxu0 0.0
    %311 = vmatprep.subr.mxu0 0.0
    %312 = vmatpush1.msra.mxu0 0.0
    %313 = vmatprep.subr.mxu0 0.0
    %314 = vmatpush1.msra.mxu0 0.0
    %315 = vmatprep.subr.mxu0 0.0
    %316 = vmatpush1.msra.mxu0 0.0
    %317 = vmatprep.subr.mxu0 0.0
    %318 = vmatpush1.msra.mxu0 0.0
    %319 = vmatprep.subr.mxu0 0.0
    %320 = vmatpush1.msra.mxu0 0.0
    %321 = vmatprep.subr.mxu0 0.0
    %322 = vmatpush1.msra.mxu0 0.0
    %323 = vmatprep.mubr.f32.mxu0 0.0
    %324 = vmatmul.mubr.f32.gmra.mrb[0].mxu0 %v253
    %v325 = vpop.f32.mrb[0].mxu0
    %v326 = vadd.f32 %v249, %v325
    %v327 = vpop.f32.mrb[0].mxu0
    %328 = vdwg.mxu0
    %vm329 = vcmask 125952
    %330 = vst.msk [vmem:[#allocation7] sm:$0xf] %vm329, %v326
    // Predicated region
    $region34: #{tpu_custom_call.1} parent=1 // pred_check
      _
    $region35: #{tpu_custom_call.1} parent=1 // pred_check_branch
      %332 = sbr.rel (0) target = $region37
    $region36: #{tpu_custom_call.1} parent=1 // pred_region
      %s334 = ssub.s32 64, 64
      %335 = vsyncadd [#allocation4], %s334
      %s337 = sshll.u32 [#allocation7], 4
      %s338 = int_to_ptr.vmem [resolvable:$true] %s337
      %340 = dma.vmem_to_hbm [thread:$0]  %s338, 64, %s6, [#allocation4]
    $region37: #{tpu_custom_call.1} parent=1 // pred_fallthru
      _
    // Predicated region
    $region38: #{tpu_custom_call.1} parent=1 // pred_check
      _
    $region39: #{tpu_custom_call.1} parent=1 // pred_check_branch
      %342 = sbr.rel (0) target = $region41
    $region40: #{tpu_custom_call.1} parent=1 // pred_region
      %343 = dma.done [#allocation4], 64
    $region41: #{tpu_custom_call.1} parent=1 // pred_fallthru
      _
    %344 = vsyncpa [#allocation3], 1
    %345 = vsyncpa [#allocation4], 1
    %346 = vsyncpa [#allocation5], 1

</llo_original>
